<compile_context>
chip_gen: v7x
topology: tpu7x:2x2x1
jax: 0.10.0
libtpu: 0.0.40
codegen_flags: <defaults>
</compile_context>

<pallas_src>
import jax
import jax.numpy as jnp
from jax.experimental import pallas as pl
from jax.experimental.pallas import tpu as pltpu

_TARGET_TILE_ELEMS = 256 * 1024  # ~11.5 MiB of double-buffered VMEM across 8 buffers


def _elementwise_kernel(x_ref, add_ref, sub_ref, mul_ref, div_ref,
                        gt_ref, lt_ref, eq_ref):
    x = x_ref[...]
    add_ref[...] = x + 2.0
    sub_ref[...] = x - 3.0
    mul_ref[...] = x * 4.0
    # multiply by precomputed reciprocal instead of divide (kernel is HBM-bound,
    # but this keeps the op a single VALU multiply; ~1-ulp diff vs true division)
    div_ref[...] = x * 0.2
    gt_ref[...] = (x > 1.0).astype(gt_ref.dtype)
    lt_ref[...] = (x < 2.0).astype(lt_ref.dtype)
    eq_ref[...] = (x == 0.0).astype(eq_ref.dtype)


def _pick_layout(n_elem):
    """Pick a lane-dense (rows, cols) layout and a row-tile size."""
    for cols in (1024, 512, 256, 128):
        if n_elem % cols == 0:
            rows = n_elem // cols
            # target ~256K elements / tile, row count a multiple of 8
            tr = max(8, (_TARGET_TILE_ELEMS // cols) // 8 * 8)
            tile_rows = rows if rows <= tr else tr
            return rows, cols, tile_rows
    raise ValueError("total element count must be a multiple of 128")


def _build_call(rows, cols, tile_rows, dtype, mask_dtype):
    spec = pl.BlockSpec((tile_rows, cols), lambda i: (i, 0))
    out_shapes = (
        jax.ShapeDtypeStruct((rows, cols), dtype),       # add
        jax.ShapeDtypeStruct((rows, cols), dtype),       # sub
        jax.ShapeDtypeStruct((rows, cols), dtype),       # mul
        jax.ShapeDtypeStruct((rows, cols), dtype),       # div
        jax.ShapeDtypeStruct((rows, cols), mask_dtype),  # gt
        jax.ShapeDtypeStruct((rows, cols), mask_dtype),  # lt
        jax.ShapeDtypeStruct((rows, cols), mask_dtype),  # eq
    )
    return pl.pallas_call(
        _elementwise_kernel,
        out_shape=out_shapes,
        grid=(pl.cdiv(rows, tile_rows),),
        in_specs=[spec],
        out_specs=tuple([spec] * 7),
        compiler_params=pltpu.CompilerParams(
            dimension_semantics=("parallel",)),
    )


def pt_module_forward(x):
    """Pallas implementation of PtModule.forward.

    Returns (add, sub, mul, div, gt, lt, eq) with the same shapes/dtypes as the
    PyTorch module (float outputs + bool masks).
    """
    orig_shape = x.shape
    n_elem = x.size
    rows, cols, tile_rows = _pick_layout(n_elem)
    x2d = x.reshape(rows, cols)

    try:
        call = _build_call(rows, cols, tile_rows, x.dtype, jnp.bool_)
        add_r, sub_r, mul_r, div_r, gt_r, lt_r, eq_r = call(x2d)
    except Exception:
        # TODO(synk): some Pallas/Mosaic builds reject bool output refs; fall
        # back to int8 masks + a wrapper-side cast (extra XLA pass over masks).
        call = _build_call(rows, cols, tile_rows, x.dtype, jnp.int8)
        add_r, sub_r, mul_r, div_r, gt_r, lt_r, eq_r = call(x2d)
        gt_r = gt_r.astype(jnp.bool_)
        lt_r = lt_r.astype(jnp.bool_)
        eq_r = eq_r.astype(jnp.bool_)

    return (
        add_r.reshape(orig_shape),
        sub_r.reshape(orig_shape),
        mul_r.reshape(orig_shape),
        div_r.reshape(orig_shape),
        gt_r.reshape(orig_shape),
        lt_r.reshape(orig_shape),
        eq_r.reshape(orig_shape),
    )


if __name__ == "__main__":
    key = jax.random.PRNGKey(0)
    x = jax.random.normal(key, (2, 4, 16, 16), dtype=jnp.float32)
    # sprinkle in exact zeros so the == 0 mask is non-trivial
    x = x.at[0, 0, 0, :4].set(0.0)

    outs = pt_module_forward(x)
    outs = jax.block_until_ready(outs)

    # reference check (plain JAX)
    refs = (x + 2, x - 3, x * 4, x / 5, x > 1, x < 2, x == 0)
    ok = True
    for got, ref in zip(outs, refs):
        assert got.shape == ref.shape and got.dtype == ref.dtype
        if got.dtype == jnp.bool_:
            ok &= bool(jnp.all(got == ref))
        else:
            ok &= bool(jnp.allclose(got, ref, atol=1e-6))
    assert ok, "mismatch vs reference"
    print("KERNEL_OK")
</pallas_src>

<mosaic_0001>
module attributes {stable_mosaic.version = 11 : i64} {
  func.func @_elementwise_kernel(%arg0: i32, %arg1: memref<2x1024xf32, #tpu.memory_space<vmem>>, %arg2: memref<2x1024xf32, #tpu.memory_space<vmem>>, %arg3: memref<2x1024xf32, #tpu.memory_space<vmem>>, %arg4: memref<2x1024xf32, #tpu.memory_space<vmem>>, %arg5: memref<2x1024xf32, #tpu.memory_space<vmem>>, %arg6: memref<2x1024xi32, #tpu.memory_space<vmem>>, %arg7: memref<2x1024xi32, #tpu.memory_space<vmem>>, %arg8: memref<2x1024xi32, #tpu.memory_space<vmem>>) attributes {dimension_semantics = [#tpu.dimension_semantics<parallel>], iteration_bounds = array<i64: 1>, scalar_prefetch = 0 : i64, scratch_operands = 0 : i64, tpu.core_type = #tpu.core_type<tc>, window_params = [{transform_indices = @transform_0, window_bounds = array<i64: 2, 1024>}, {transform_indices = @transform_1, window_bounds = array<i64: 2, 1024>}, {transform_indices = @transform_2, window_bounds = array<i64: 2, 1024>}, {transform_indices = @transform_3, window_bounds = array<i64: 2, 1024>}, {transform_indices = @transform_4, window_bounds = array<i64: 2, 1024>}, {transform_indices = @transform_5, window_bounds = array<i64: 2, 1024>}, {transform_indices = @transform_6, window_bounds = array<i64: 2, 1024>}, {transform_indices = @transform_7, window_bounds = array<i64: 2, 1024>}]} {
    %c0 = arith.constant 0 : index
    %c0_0 = arith.constant 0 : index
    %0 = vector.load %arg1[%c0, %c0_0] : memref<2x1024xf32, #tpu.memory_space<vmem>>, vector<2x1024xf32>
    %cst = arith.constant 2.000000e+00 : f32
    %1 = vector.broadcast %cst : f32 to vector<2x1024xf32>
    %2 = arith.addf %0, %1 : vector<2x1024xf32>
    %c0_1 = arith.constant 0 : index
    %c0_2 = arith.constant 0 : index
    %3 = vector.load %arg2[%c0_1, %c0_2] : memref<2x1024xf32, #tpu.memory_space<vmem>>, vector<2x1024xf32>
    tpu.vector_store %arg2[%c0_1, %c0_2], %2 {strides = array<i32>} : memref<2x1024xf32, #tpu.memory_space<vmem>>, vector<2x1024xf32>,
    %cst_3 = arith.constant 3.000000e+00 : f32
    %4 = vector.broadcast %cst_3 : f32 to vector<2x1024xf32>
    %5 = arith.subf %0, %4 : vector<2x1024xf32>
    %c0_4 = arith.constant 0 : index
    %c0_5 = arith.constant 0 : index
    %6 = vector.load %arg3[%c0_4, %c0_5] : memref<2x1024xf32, #tpu.memory_space<vmem>>, vector<2x1024xf32>
    tpu.vector_store %arg3[%c0_4, %c0_5], %5 {strides = array<i32>} : memref<2x1024xf32, #tpu.memory_space<vmem>>, vector<2x1024xf32>,
    %cst_6 = arith.constant 4.000000e+00 : f32
    %7 = vector.broadcast %cst_6 : f32 to vector<2x1024xf32>
    %8 = arith.mulf %0, %7 : vector<2x1024xf32>
    %c0_7 = arith.constant 0 : index
    %c0_8 = arith.constant 0 : index
    %9 = vector.load %arg4[%c0_7, %c0_8] : memref<2x1024xf32, #tpu.memory_space<vmem>>, vector<2x1024xf32>
    tpu.vector_store %arg4[%c0_7, %c0_8], %8 {strides = array<i32>} : memref<2x1024xf32, #tpu.memory_space<vmem>>, vector<2x1024xf32>,
    %cst_9 = arith.constant 2.000000e-01 : f32
    %10 = vector.broadcast %cst_9 : f32 to vector<2x1024xf32>
    %11 = arith.mulf %0, %10 : vector<2x1024xf32>
    %c0_10 = arith.constant 0 : index
    %c0_11 = arith.constant 0 : index
    %12 = vector.load %arg5[%c0_10, %c0_11] : memref<2x1024xf32, #tpu.memory_space<vmem>>, vector<2x1024xf32>
    tpu.vector_store %arg5[%c0_10, %c0_11], %11 {strides = array<i32>} : memref<2x1024xf32, #tpu.memory_space<vmem>>, vector<2x1024xf32>,
    %cst_12 = arith.constant 1.000000e+00 : f32
    %13 = vector.broadcast %cst_12 : f32 to vector<2x1024xf32>
    %14 = arith.cmpf ogt, %0, %13 : vector<2x1024xf32>
    %c0_13 = arith.constant 0 : index
    %c0_14 = arith.constant 0 : index
    %15 = vector.load %arg6[%c0_13, %c0_14] : memref<2x1024xi32, #tpu.memory_space<vmem>>, vector<2x1024xi32>
    %16 = arith.extui %14 : vector<2x1024xi1> to vector<2x1024xi32>
    %cst_15 = arith.constant dense<0> : vector<2x1024xi32>
    %17 = arith.cmpi ne, %15, %cst_15 : vector<2x1024xi32>
    tpu.vector_store %arg6[%c0_13, %c0_14], %16 {strides = array<i32>} : memref<2x1024xi32, #tpu.memory_space<vmem>>, vector<2x1024xi32>,
    %cst_16 = arith.constant 2.000000e+00 : f32
    %18 = vector.broadcast %cst_16 : f32 to vector<2x1024xf32>
    %19 = arith.cmpf olt, %0, %18 : vector<2x1024xf32>
    %c0_17 = arith.constant 0 : index
    %c0_18 = arith.constant 0 : index
    %20 = vector.load %arg7[%c0_17, %c0_18] : memref<2x1024xi32, #tpu.memory_space<vmem>>, vector<2x1024xi32>
    %21 = arith.extui %19 : vector<2x1024xi1> to vector<2x1024xi32>
    %cst_19 = arith.constant dense<0> : vector<2x1024xi32>
    %22 = arith.cmpi ne, %20, %cst_19 : vector<2x1024xi32>
    tpu.vector_store %arg7[%c0_17, %c0_18], %21 {strides = array<i32>} : memref<2x1024xi32, #tpu.memory_space<vmem>>, vector<2x1024xi32>,
    %cst_20 = arith.constant 0.000000e+00 : f32
    %23 = vector.broadcast %cst_20 : f32 to vector<2x1024xf32>
    %24 = arith.cmpf oeq, %0, %23 : vector<2x1024xf32>
    %c0_21 = arith.constant 0 : index
    %c0_22 = arith.constant 0 : index
    %25 = vector.load %arg8[%c0_21, %c0_22] : memref<2x1024xi32, #tpu.memory_space<vmem>>, vector<2x1024xi32>
    %26 = arith.extui %24 : vector<2x1024xi1> to vector<2x1024xi32>
    %cst_23 = arith.constant dense<0> : vector<2x1024xi32>
    %27 = arith.cmpi ne, %25, %cst_23 : vector<2x1024xi32>
    tpu.vector_store %arg8[%c0_21, %c0_22], %26 {strides = array<i32>} : memref<2x1024xi32, #tpu.memory_space<vmem>>, vector<2x1024xi32>,
    return
  }
  func.func @transform_0(%arg0: i32) -> (i32, i32) {
    %c0_i32 = arith.constant 0 : i32
    %c0_i32_0 = arith.constant 0 : i32
    return %arg0, %c0_i32 : i32, i32
  }
  func.func @transform_1(%arg0: i32) -> (i32, i32) {
    %c0_i32 = arith.constant 0 : i32
    %c0_i32_0 = arith.constant 0 : i32
    return %arg0, %c0_i32 : i32, i32
  }
  func.func @transform_2(%arg0: i32) -> (i32, i32) {
    %c0_i32 = arith.constant 0 : i32
    %c0_i32_0 = arith.constant 0 : i32
    return %arg0, %c0_i32 : i32, i32
  }
  func.func @transform_3(%arg0: i32) -> (i32, i32) {
    %c0_i32 = arith.constant 0 : i32
    %c0_i32_0 = arith.constant 0 : i32
    return %arg0, %c0_i32 : i32, i32
  }
  func.func @transform_4(%arg0: i32) -> (i32, i32) {
    %c0_i32 = arith.constant 0 : i32
    %c0_i32_0 = arith.constant 0 : i32
    return %arg0, %c0_i32 : i32, i32
  }
  func.func @transform_5(%arg0: i32) -> (i32, i32) {
    %c0_i32 = arith.constant 0 : i32
    %c0_i32_0 = arith.constant 0 : i32
    return %arg0, %c0_i32 : i32, i32
  }
  func.func @transform_6(%arg0: i32) -> (i32, i32) {
    %c0_i32 = arith.constant 0 : i32
    %c0_i32_0 = arith.constant 0 : i32
    return %arg0, %c0_i32 : i32, i32
  }
  func.func @transform_7(%arg0: i32) -> (i32, i32) {
    %c0_i32 = arith.constant 0 : i32
    %c0_i32_0 = arith.constant 0 : i32
    return %arg0, %c0_i32 : i32, i32
  }
}

module attributes {stable_mosaic.version = 11 : i64} {
  func.func @_elementwise_kernel(%arg0: i32, %arg1: memref<2x1024xf32, #tpu.memory_space<vmem>>, %arg2: memref<2x1024xf32, #tpu.memory_space<vmem>>, %arg3: memref<2x1024xf32, #tpu.memory_space<vmem>>, %arg4: memref<2x1024xf32, #tpu.memory_space<vmem>>, %arg5: memref<2x1024xf32, #tpu.memory_space<vmem>>, %arg6: memref<2x1024xi8, #tpu.memory_space<vmem>>, %arg7: memref<2x1024xi8, #tpu.memory_space<vmem>>, %arg8: memref<2x1024xi8, #tpu.memory_space<vmem>>) attributes {dimension_semantics = [#tpu.dimension_semantics<parallel>], iteration_bounds = array<i64: 1>, scalar_prefetch = 0 : i64, scratch_operands = 0 : i64, tpu.core_type = #tpu.core_type<tc>, window_params = [{transform_indices = @transform_0, window_bounds = array<i64: 2, 1024>}, {transform_indices = @transform_1, window_bounds = array<i64: 2, 1024>}, {transform_indices = @transform_2, window_bounds = array<i64: 2, 1024>}, {transform_indices = @transform_3, window_bounds = array<i64: 2, 1024>}, {transform_indices = @transform_4, window_bounds = array<i64: 2, 1024>}, {transform_indices = @transform_5, window_bounds = array<i64: 2, 1024>}, {transform_indices = @transform_6, window_bounds = array<i64: 2, 1024>}, {transform_indices = @transform_7, window_bounds = array<i64: 2, 1024>}]} {
    %c0 = arith.constant 0 : index
    %c0_0 = arith.constant 0 : index
    %0 = vector.load %arg1[%c0, %c0_0] : memref<2x1024xf32, #tpu.memory_space<vmem>>, vector<2x1024xf32>
    %cst = arith.constant 2.000000e+00 : f32
    %1 = vector.broadcast %cst : f32 to vector<2x1024xf32>
    %2 = arith.addf %0, %1 : vector<2x1024xf32>
    %c0_1 = arith.constant 0 : index
    %c0_2 = arith.constant 0 : index
    %3 = vector.load %arg2[%c0_1, %c0_2] : memref<2x1024xf32, #tpu.memory_space<vmem>>, vector<2x1024xf32>
    tpu.vector_store %arg2[%c0_1, %c0_2], %2 {strides = array<i32>} : memref<2x1024xf32, #tpu.memory_space<vmem>>, vector<2x1024xf32>,
    %cst_3 = arith.constant 3.000000e+00 : f32
    %4 = vector.broadcast %cst_3 : f32 to vector<2x1024xf32>
    %5 = arith.subf %0, %4 : vector<2x1024xf32>
    %c0_4 = arith.constant 0 : index
    %c0_5 = arith.constant 0 : index
    %6 = vector.load %arg3[%c0_4, %c0_5] : memref<2x1024xf32, #tpu.memory_space<vmem>>, vector<2x1024xf32>
    tpu.vector_store %arg3[%c0_4, %c0_5], %5 {strides = array<i32>} : memref<2x1024xf32, #tpu.memory_space<vmem>>, vector<2x1024xf32>,
    %cst_6 = arith.constant 4.000000e+00 : f32
    %7 = vector.broadcast %cst_6 : f32 to vector<2x1024xf32>
    %8 = arith.mulf %0, %7 : vector<2x1024xf32>
    %c0_7 = arith.constant 0 : index
    %c0_8 = arith.constant 0 : index
    %9 = vector.load %arg4[%c0_7, %c0_8] : memref<2x1024xf32, #tpu.memory_space<vmem>>, vector<2x1024xf32>
    tpu.vector_store %arg4[%c0_7, %c0_8], %8 {strides = array<i32>} : memref<2x1024xf32, #tpu.memory_space<vmem>>, vector<2x1024xf32>,
    %cst_9 = arith.constant 2.000000e-01 : f32
    %10 = vector.broadcast %cst_9 : f32 to vector<2x1024xf32>
    %11 = arith.mulf %0, %10 : vector<2x1024xf32>
    %c0_10 = arith.constant 0 : index
    %c0_11 = arith.constant 0 : index
    %12 = vector.load %arg5[%c0_10, %c0_11] : memref<2x1024xf32, #tpu.memory_space<vmem>>, vector<2x1024xf32>
    tpu.vector_store %arg5[%c0_10, %c0_11], %11 {strides = array<i32>} : memref<2x1024xf32, #tpu.memory_space<vmem>>, vector<2x1024xf32>,
    %cst_12 = arith.constant 1.000000e+00 : f32
    %13 = vector.broadcast %cst_12 : f32 to vector<2x1024xf32>
    %14 = arith.cmpf ogt, %0, %13 : vector<2x1024xf32>
    %15 = arith.extui %14 : vector<2x1024xi1> to vector<2x1024xi8>
    %c0_13 = arith.constant 0 : index
    %c0_14 = arith.constant 0 : index
    %16 = vector.load %arg6[%c0_13, %c0_14] : memref<2x1024xi8, #tpu.memory_space<vmem>>, vector<2x1024xi8>
    tpu.vector_store %arg6[%c0_13, %c0_14], %15 {strides = array<i32>} : memref<2x1024xi8, #tpu.memory_space<vmem>>, vector<2x1024xi8>,
    %cst_15 = arith.constant 2.000000e+00 : f32
    %17 = vector.broadcast %cst_15 : f32 to vector<2x1024xf32>
    %18 = arith.cmpf olt, %0, %17 : vector<2x1024xf32>
    %19 = arith.extui %18 : vector<2x1024xi1> to vector<2x1024xi8>
    %c0_16 = arith.constant 0 : index
    %c0_17 = arith.constant 0 : index
    %20 = vector.load %arg7[%c0_16, %c0_17] : memref<2x1024xi8, #tpu.memory_space<vmem>>, vector<2x1024xi8>
    tpu.vector_store %arg7[%c0_16, %c0_17], %19 {strides = array<i32>} : memref<2x1024xi8, #tpu.memory_space<vmem>>, vector<2x1024xi8>,
    %cst_18 = arith.constant 0.000000e+00 : f32
    %21 = vector.broadcast %cst_18 : f32 to vector<2x1024xf32>
    %22 = arith.cmpf oeq, %0, %21 : vector<2x1024xf32>
    %23 = arith.extui %22 : vector<2x1024xi1> to vector<2x1024xi8>
    %c0_19 = arith.constant 0 : index
    %c0_20 = arith.constant 0 : index
    %24 = vector.load %arg8[%c0_19, %c0_20] : memref<2x1024xi8, #tpu.memory_space<vmem>>, vector<2x1024xi8>
    tpu.vector_store %arg8[%c0_19, %c0_20], %23 {strides = array<i32>} : memref<2x1024xi8, #tpu.memory_space<vmem>>, vector<2x1024xi8>,
    return
  }
  func.func @transform_0(%arg0: i32) -> (i32, i32) {
    %c0_i32 = arith.constant 0 : i32
    %c0_i32_0 = arith.constant 0 : i32
    return %arg0, %c0_i32 : i32, i32
  }
  func.func @transform_1(%arg0: i32) -> (i32, i32) {
    %c0_i32 = arith.constant 0 : i32
    %c0_i32_0 = arith.constant 0 : i32
    return %arg0, %c0_i32 : i32, i32
  }
  func.func @transform_2(%arg0: i32) -> (i32, i32) {
    %c0_i32 = arith.constant 0 : i32
    %c0_i32_0 = arith.constant 0 : i32
    return %arg0, %c0_i32 : i32, i32
  }
  func.func @transform_3(%arg0: i32) -> (i32, i32) {
    %c0_i32 = arith.constant 0 : i32
    %c0_i32_0 = arith.constant 0 : i32
    return %arg0, %c0_i32 : i32, i32
  }
  func.func @transform_4(%arg0: i32) -> (i32, i32) {
    %c0_i32 = arith.constant 0 : i32
    %c0_i32_0 = arith.constant 0 : i32
    return %arg0, %c0_i32 : i32, i32
  }
  func.func @transform_5(%arg0: i32) -> (i32, i32) {
    %c0_i32 = arith.constant 0 : i32
    %c0_i32_0 = arith.constant 0 : i32
    return %arg0, %c0_i32 : i32, i32
  }
  func.func @transform_6(%arg0: i32) -> (i32, i32) {
    %c0_i32 = arith.constant 0 : i32
    %c0_i32_0 = arith.constant 0 : i32
    return %arg0, %c0_i32 : i32, i32
  }
  func.func @transform_7(%arg0: i32) -> (i32, i32) {
    %c0_i32 = arith.constant 0 : i32
    %c0_i32_0 = arith.constant 0 : i32
    return %arg0, %c0_i32 : i32, i32
  }
}

</mosaic_0001>

<llo_original>
// kernel: tpu_custom_call.1
$region0: #{tpu_custom_call.1}
  #allocation0 [shape = 'u32[]', space=smem, size = 0x4, offset = 0x4, fixed_abs, tag = 'smem constant byte address 0x4 - core index']
  #allocation1 [shape = 'u32[144,128]{1,0:T(1,128)}', space=vmem, size = 0x12000, scoped, tag = 'internal scratch']
  %s0 = inlined_call_operand.hbm [shape: f32[2,1024], index: 0, kind: input, shape index: {}]
  %s1 = inlined_call_operand.hbm [shape: f32[2,1024], index: 1, kind: output, shape index: {0}]
  %s2 = inlined_call_operand.hbm [shape: f32[2,1024], index: 2, kind: output, shape index: {1}]
  %s3 = inlined_call_operand.hbm [shape: f32[2,1024], index: 3, kind: output, shape index: {2}]
  %s4 = inlined_call_operand.hbm [shape: f32[2,1024], index: 4, kind: output, shape index: {3}]
  %s5 = inlined_call_operand.vmem [shape: s32[2,1024], index: 5, kind: output, shape index: {4}]
  %s6 = inlined_call_operand.vmem [shape: s32[2,1024], index: 6, kind: output, shape index: {5}]
  %s7 = inlined_call_operand.vmem [shape: s32[2,1024], index: 7, kind: output, shape index: {6}]
  %8 = xla_tuple %s1, %s2, %s3, %s4, %s5, %s6, %s7
  %s9 = sld [smem:[#allocation0]]
  $region66: #{tpu_custom_call.1} parent=0
    _
  %s11 = ssub.s32 1, %s9
  %s12 = scalar_select 0, %s11, %s9
  $region1: #{tpu_custom_call.1} parent=0
    #allocation2 [shape = 'u8[8192]{0}', space=vmem, size = 0x2000, scoped, tag = 'input window, operand 0, single buffered']
    #allocation3 [shape = 's32[1]{0}', space=sflag, size = 0x4, scoped, tag = 'scoped memory for tpu_custom_call.1']
    #allocation4 [shape = 's32[1]{0}', space=sflag, size = 0x4, scoped, tag = 'scoped memory for tpu_custom_call.1']
    #allocation5 [shape = 'u8[8192]{0}', space=vmem, size = 0x2000, scoped, tag = 'output window, operand 0, single buffered']
    #allocation6 [shape = 'u8[8192]{0}', space=vmem, size = 0x2000, scoped, tag = 'output window, operand 1, single buffered']
    #allocation7 [shape = 's32[1]{0}', space=sflag, size = 0x4, scoped, tag = 'scoped memory for tpu_custom_call.1']
    #allocation8 [shape = 'u8[8192]{0}', space=vmem, size = 0x2000, scoped, tag = 'output window, operand 2, single buffered']
    #allocation9 [shape = 'u8[8192]{0}', space=vmem, size = 0x2000, scoped, tag = 'output window, operand 3, single buffered']
    #allocation10 [shape = 's32[1]{0}', space=sflag, size = 0x4, scoped, tag = 'scoped memory for tpu_custom_call.1']
    %13 = vsyncpa [#allocation3], 0
    %14 = vsyncpa [#allocation4], 0
    %15 = vsyncpa [#allocation7], 0
    %16 = vsyncpa [#allocation10], 0
    // Predicated region
    $region2: #{tpu_custom_call.1} parent=1 // pred_check
      _
    $region3: #{tpu_custom_call.1} parent=1 // pred_check_branch
      %18 = sbr.rel (0) target = $region5
    $region4: #{tpu_custom_call.1} parent=1 // pred_region
      %s20 = ssub.s32 256, 256
      %21 = vsyncadd [#allocation3], %s20
      %s23 = sshll.u32 [#allocation2], 4
      %s24 = int_to_ptr.vmem [resolvable:$true] %s23
      %26 = dma.hbm_to_vmem [thread:$0]  %s0, 256, %s24, [#allocation3]
    $region5: #{tpu_custom_call.1} parent=1 // pred_fallthru
      _
    // Predicated region
    $region6: #{tpu_custom_call.1} parent=1 // pred_check
      _
    $region7: #{tpu_custom_call.1} parent=1 // pred_check_branch
      %28 = sbr.rel (0) target = $region9
    $region8: #{tpu_custom_call.1} parent=1 // pred_region
      %29 = dma.done [#allocation3], 256
    $region9: #{tpu_custom_call.1} parent=1 // pred_fallthru
      _
    %v30 = vld [vmem:[#allocation2] sm:$0xff]
    %v31 = vld [vmem:[#allocation2 + $0x8] sm:$0xff]
    %v32 = vadd.f32 %v30, 2.0
    %v33 = vadd.f32 %v31, 2.0
    %34 = vst [vmem:[#allocation5] sm:$0xff] %v32
    %35 = vst [vmem:[#allocation5 + $0x8] sm:$0xff] %v33
    %v36 = vsub.f32 %v30, 3.0
    %v37 = vsub.f32 %v31, 3.0
    %38 = vst [vmem:[#allocation6] sm:$0xff] %v36
    %39 = vst [vmem:[#allocation6 + $0x8] sm:$0xff] %v37
    %v40 = vmul.f32 %v30, 4.0
    %v41 = vmul.f32 %v31, 4.0
    %42 = vst [vmem:[#allocation8] sm:$0xff] %v40
    %43 = vst [vmem:[#allocation8 + $0x8] sm:$0xff] %v41
    %v44 = vmul.f32 %v30, 0.2
    %v45 = vmul.f32 %v31, 0.2
    %46 = vst [vmem:[#allocation9] sm:$0xff] %v44
    %47 = vst [vmem:[#allocation9 + $0x8] sm:$0xff] %v45
    %vm48 = vcmp.gt.f32.partialorder %v30, 1.0
    %vm49 = vcmp.gt.f32.partialorder %v31, 1.0
    %v50 = vsel %vm48, 1, 0
    %v51 = vsel %vm49, 1, 0
    %52 = vst [vmem:[%s5] sm:$0xff] %v50
    %53 = vst [vmem:[%s5 + $0x8] sm:$0xff] %v51
    %vm54 = vcmp.lt.f32.partialorder %v30, 2.0
    %vm55 = vcmp.lt.f32.partialorder %v31, 2.0
    %v56 = vsel %vm54, 1, 0
    %v57 = vsel %vm55, 1, 0
    %58 = vst [vmem:[%s6] sm:$0xff] %v56
    %59 = vst [vmem:[%s6 + $0x8] sm:$0xff] %v57
    %vm60 = vcmp.eq.f32.partialorder %v30, 0.0
    %vm61 = vcmp.eq.f32.partialorder %v31, 0.0
    %v62 = vsel %vm60, 1, 0
    %v63 = vsel %vm61, 1, 0
    %64 = vst [vmem:[%s7] sm:$0xff] %v62
    %65 = vst [vmem:[%s7 + $0x8] sm:$0xff] %v63
    // Predicated region
    $region10: #{tpu_custom_call.1} parent=1 // pred_check
      _
    $region11: #{tpu_custom_call.1} parent=1 // pred_check_branch
      %67 = sbr.rel (0) target = $region13
    $region12: #{tpu_custom_call.1} parent=1 // pred_region
      %s69 = ssub.s32 256, 256
      %70 = vsyncadd [#allocation4], %s69
      %s72 = sshll.u32 [#allocation5], 4
      %s73 = int_to_ptr.vmem [resolvable:$true] %s72
      %75 = dma.vmem_to_hbm [thread:$0]  %s73, 256, %s1, [#allocation4]
    $region13: #{tpu_custom_call.1} parent=1 // pred_fallthru
      _
    // Predicated region
    $region14: #{tpu_custom_call.1} parent=1 // pred_check
      _
    $region15: #{tpu_custom_call.1} parent=1 // pred_check_branch
      %77 = sbr.rel (0) target = $region17
    $region16: #{tpu_custom_call.1} parent=1 // pred_region
      %s79 = ssub.s32 256, 256
      %80 = vsyncadd [#allocation7], %s79
      %s82 = sshll.u32 [#allocation6], 4
      %s83 = int_to_ptr.vmem [resolvable:$true] %s82
      %85 = dma.vmem_to_hbm [thread:$0]  %s83, 256, %s2, [#allocation7]
    $region17: #{tpu_custom_call.1} parent=1 // pred_fallthru
      _
    // Predicated region
    $region18: #{tpu_custom_call.1} parent=1 // pred_check
      _
    $region19: #{tpu_custom_call.1} parent=1 // pred_check_branch
      %87 = sbr.rel (0) target = $region21
    $region20: #{tpu_custom_call.1} parent=1 // pred_region
      %s89 = ssub.s32 256, 256
      %90 = vsyncadd [#allocation7], %s89
      %s92 = sshll.u32 [#allocation8], 4
      %s93 = int_to_ptr.vmem [resolvable:$true] %s92
      %95 = dma.vmem_to_hbm [thread:$0]  %s93, 256, %s3, [#allocation7]
    $region21: #{tpu_custom_call.1} parent=1 // pred_fallthru
      _
    // Predicated region
    $region22: #{tpu_custom_call.1} parent=1 // pred_check
      _
    $region23: #{tpu_custom_call.1} parent=1 // pred_check_branch
      %97 = sbr.rel (0) target = $region25
    $region24: #{tpu_custom_call.1} parent=1 // pred_region
      %s99 = ssub.s32 256, 256
      %100 = vsyncadd [#allocation10], %s99
      %s102 = sshll.u32 [#allocation9], 4
      %s103 = int_to_ptr.vmem [resolvable:$true] %s102
      %105 = dma.vmem_to_hbm [thread:$0]  %s103, 256, %s4, [#allocation10]
    $region25: #{tpu_custom_call.1} parent=1 // pred_fallthru
      _
    // Predicated region
    $region26: #{tpu_custom_call.1} parent=1 // pred_check
      _
    $region27: #{tpu_custom_call.1} parent=1 // pred_check_branch
      %107 = sbr.rel (0) target = $region29
    $region28: #{tpu_custom_call.1} parent=1 // pred_region
      _
    $region29: #{tpu_custom_call.1} parent=1 // pred_fallthru
      _
    // Predicated region
    $region30: #{tpu_custom_call.1} parent=1 // pred_check
      _
    $region31: #{tpu_custom_call.1} parent=1 // pred_check_branch
      %109 = sbr.rel (0) target = $region33
    $region32: #{tpu_custom_call.1} parent=1 // pred_region
      _
    $region33: #{tpu_custom_call.1} parent=1 // pred_fallthru
      _
    // Predicated region
    $region34: #{tpu_custom_call.1} parent=1 // pred_check
      _
    $region35: #{tpu_custom_call.1} parent=1 // pred_check_branch
      %111 = sbr.rel (0) target = $region37
    $region36: #{tpu_custom_call.1} parent=1 // pred_region
      _
    $region37: #{tpu_custom_call.1} parent=1 // pred_fallthru
      _
    // Predicated region
    $region38: #{tpu_custom_call.1} parent=1 // pred_check
      _
    $region39: #{tpu_custom_call.1} parent=1 // pred_check_branch
      %113 = sbr.rel (0) target = $region41
    $region40: #{tpu_custom_call.1} parent=1 // pred_region
      %114 = dma.done [#allocation4], 256
    $region41: #{tpu_custom_call.1} parent=1 // pred_fallthru
      _
    // Predicated region
    $region42: #{tpu_custom_call.1} parent=1 // pred_check
      _
    $region43: #{tpu_custom_call.1} parent=1 // pred_check_branch
      %116 = sbr.rel (0) target = $region45
    $region44: #{tpu_custom_call.1} parent=1 // pred_region
      %117 = dma.done [#allocation7], 256
    $region45: #{tpu_custom_call.1} parent=1 // pred_fallthru
      _
    // Predicated region
    $region46: #{tpu_custom_call.1} parent=1 // pred_check
      _
    $region47: #{tpu_custom_call.1} parent=1 // pred_check_branch
      %119 = sbr.rel (0) target = $region49
    $region48: #{tpu_custom_call.1} parent=1 // pred_region
      %120 = dma.done [#allocation7], 256
    $region49: #{tpu_custom_call.1} parent=1 // pred_fallthru
      _
    // Predicated region
    $region50: #{tpu_custom_call.1} parent=1 // pred_check
      _
    $region51: #{tpu_custom_call.1} parent=1 // pred_check_branch
      %122 = sbr.rel (0) target = $region53
    $region52: #{tpu_custom_call.1} parent=1 // pred_region
      %123 = dma.done [#allocation10], 256
    $region53: #{tpu_custom_call.1} parent=1 // pred_fallthru
      _
    // Predicated region
    $region54: #{tpu_custom_call.1} parent=1 // pred_check
      _
    $region55: #{tpu_custom_call.1} parent=1 // pred_check_branch
      %125 = sbr.rel (0) target = $region57
    $region56: #{tpu_custom_call.1} parent=1 // pred_region
      _
    $region57: #{tpu_custom_call.1} parent=1 // pred_fallthru
      _
    // Predicated region
    $region58: #{tpu_custom_call.1} parent=1 // pred_check
      _
    $region59: #{tpu_custom_call.1} parent=1 // pred_check_branch
      %127 = sbr.rel (0) target = $region61
    $region60: #{tpu_custom_call.1} parent=1 // pred_region
      _
    $region61: #{tpu_custom_call.1} parent=1 // pred_fallthru
      _
    // Predicated region
    $region62: #{tpu_custom_call.1} parent=1 // pred_check
      _
    $region63: #{tpu_custom_call.1} parent=1 // pred_check_branch
      %129 = sbr.rel (0) target = $region65
    $region64: #{tpu_custom_call.1} parent=1 // pred_region
      _
    $region65: #{tpu_custom_call.1} parent=1 // pred_fallthru
      _
    %130 = vsyncpa [#allocation3], 1
    %131 = vsyncpa [#allocation4], 1
    %132 = vsyncpa [#allocation7], 1
    %133 = vsyncpa [#allocation10], 1

// kernel: tpu_custom_call.1
$region0: #{tpu_custom_call.1}
  #allocation0 [shape = 'u32[]', space=smem, size = 0x4, offset = 0x4, fixed_abs, tag = 'smem constant byte address 0x4 - core index']
  #allocation1 [shape = 'u32[144,128]{1,0:T(1,128)}', space=vmem, size = 0x12000, scoped, tag = 'internal scratch']
  %s0 = inlined_call_operand.hbm [shape: f32[2,1024], index: 0, kind: input, shape index: {}]
  %s1 = inlined_call_operand.hbm [shape: f32[2,1024], index: 1, kind: output, shape index: {0}]
  %s2 = inlined_call_operand.hbm [shape: f32[2,1024], index: 2, kind: output, shape index: {1}]
  %s3 = inlined_call_operand.hbm [shape: f32[2,1024], index: 3, kind: output, shape index: {2}]
  %s4 = inlined_call_operand.hbm [shape: f32[2,1024], index: 4, kind: output, shape index: {3}]
  %s5 = inlined_call_operand.hbm [shape: s8[2,1024], index: 5, kind: output, shape index: {4}]
  %s6 = inlined_call_operand.hbm [shape: s8[2,1024], index: 6, kind: output, shape index: {5}]
  %s7 = inlined_call_operand.hbm [shape: s8[2,1024], index: 7, kind: output, shape index: {6}]
  %8 = xla_tuple %s1, %s2, %s3, %s4, %s5, %s6, %s7
  %s9 = sld [smem:[#allocation0]]
  $region66: #{tpu_custom_call.1} parent=0
    _
  %s11 = ssub.s32 1, %s9
  %s12 = scalar_select 0, %s11, %s9
  $region1: #{tpu_custom_call.1} parent=0
    #allocation2 [shape = 'u8[8192]{0}', space=vmem, size = 0x2000, scoped, tag = 'input window, operand 0, single buffered']
    #allocation3 [shape = 's32[1]{0}', space=sflag, size = 0x4, scoped, tag = 'scoped memory for tpu_custom_call.1']
    #allocation4 [shape = 's32[1]{0}', space=sflag, size = 0x4, scoped, tag = 'scoped memory for tpu_custom_call.1']
    #allocation5 [shape = 'u8[8192]{0}', space=vmem, size = 0x2000, scoped, tag = 'output window, operand 0, single buffered']
    #allocation6 [shape = 'u8[8192]{0}', space=vmem, size = 0x2000, scoped, tag = 'output window, operand 1, single buffered']
    #allocation7 [shape = 's32[1]{0}', space=sflag, size = 0x4, scoped, tag = 'scoped memory for tpu_custom_call.1']
    #allocation8 [shape = 'u8[8192]{0}', space=vmem, size = 0x2000, scoped, tag = 'output window, operand 2, single buffered']
    #allocation9 [shape = 'u8[8192]{0}', space=vmem, size = 0x2000, scoped, tag = 'output window, operand 3, single buffered']
    #allocation10 [shape = 's32[1]{0}', space=sflag, size = 0x4, scoped, tag = 'scoped memory for tpu_custom_call.1']
    #allocation11 [shape = 'u8[4096]{0}', space=vmem, size = 0x1000, scoped, tag = 'output window, operand 4, single buffered']
    #allocation12 [shape = 'u8[4096]{0}', space=vmem, size = 0x1000, scoped, tag = 'output window, operand 5, single buffered']
    #allocation13 [shape = 's32[1]{0}', space=sflag, size = 0x4, scoped, tag = 'scoped memory for tpu_custom_call.1']
    #allocation14 [shape = 'u8[4096]{0}', space=vmem, size = 0x1000, scoped, tag = 'output window, operand 6, single buffered']
    %13 = vsyncpa [#allocation3], 0
    %14 = vsyncpa [#allocation4], 0
    %15 = vsyncpa [#allocation7], 0
    %16 = vsyncpa [#allocation10], 0
    %17 = vsyncpa [#allocation13], 0
    // Predicated region
    $region2: #{tpu_custom_call.1} parent=1 // pred_check
      _
    $region3: #{tpu_custom_call.1} parent=1 // pred_check_branch
      %19 = sbr.rel (0) target = $region5
    $region4: #{tpu_custom_call.1} parent=1 // pred_region
      %s21 = ssub.s32 256, 256
      %22 = vsyncadd [#allocation3], %s21
      %s24 = sshll.u32 [#allocation2], 4
      %s25 = int_to_ptr.vmem [resolvable:$true] %s24
      %27 = dma.hbm_to_vmem [thread:$0]  %s0, 256, %s25, [#allocation3]
    $region5: #{tpu_custom_call.1} parent=1 // pred_fallthru
      _
    // Predicated region
    $region6: #{tpu_custom_call.1} parent=1 // pred_check
      _
    $region7: #{tpu_custom_call.1} parent=1 // pred_check_branch
      %29 = sbr.rel (0) target = $region9
    $region8: #{tpu_custom_call.1} parent=1 // pred_region
      %30 = dma.done [#allocation3], 256
    $region9: #{tpu_custom_call.1} parent=1 // pred_fallthru
      _
    %v33 = vld [vmem:[#allocation2] sm:$0xff]
    %v34 = vld [vmem:[#allocation2 + $0x8] sm:$0xff]
    %v35 = vadd.f32 %v33, 2.0
    %v36 = vadd.f32 %v34, 2.0
    %37 = vst [vmem:[#allocation5] sm:$0xff] %v35
    %38 = vst [vmem:[#allocation5 + $0x8] sm:$0xff] %v36
    %v39 = vsub.f32 %v33, 3.0
    %v40 = vsub.f32 %v34, 3.0
    %41 = vst [vmem:[#allocation6] sm:$0xff] %v39
    %42 = vst [vmem:[#allocation6 + $0x8] sm:$0xff] %v40
    %v43 = vmul.f32 %v33, 4.0
    %v44 = vmul.f32 %v34, 4.0
    %45 = vst [vmem:[#allocation8] sm:$0xff] %v43
    %46 = vst [vmem:[#allocation8 + $0x8] sm:$0xff] %v44
    %v47 = vmul.f32 %v33, 0.2
    %v48 = vmul.f32 %v34, 0.2
    %49 = vst [vmem:[#allocation9] sm:$0xff] %v47
    %50 = vst [vmem:[#allocation9 + $0x8] sm:$0xff] %v48
    %vm51 = vcmp.gt.f32.partialorder %v33, 1.0
    %vm52 = vcmp.gt.f32.partialorder %v34, 1.0
    %v53 = vsel %vm51, 1, 0
    %v54 = vsel %vm52, 1, 0
    %v55 = vcombine.high %v53, %v53
    %v57 = vunpack.c.l.s4 1983009808
    %v58 = vunpack.c.0.s8 %v57
    %v59 = vlaneseq
    %v60 = vshrl.u32 %v59, 7
    %v61 = vsub.s32 %v58, %v60
    %v62 = vrot.slane %v53, %v61
    %v64 = vunpack.c.l.s4 1983009808
    %v65 = vunpack.c.0.s8 %v64
    %v66 = vlaneseq
    %v67 = vshrl.u32 %v66, 7
    %v68 = vsub.s32 %v65, %v67
    %v69 = vrot.slane %v55, %v68
    %v70 = vcombine.high %v54, %v54
    %v72 = vunpack.c.l.s4 1983009808
    %v73 = vunpack.c.0.s8 %v72
    %v74 = vlaneseq
    %v75 = vshrl.u32 %v74, 7
    %v76 = vsub.s32 %v73, %v75
    %v77 = vrot.slane %v54, %v76
    %v79 = vunpack.c.l.s4 1983009808
    %v80 = vunpack.c.0.s8 %v79
    %v81 = vlaneseq
    %v82 = vshrl.u32 %v81, 7
    %v83 = vsub.s32 %v80, %v82
    %v84 = vrot.slane %v70, %v83
    %vm85 = vcmp.ne.s32.totalorder %v62, 0
    %vm86 = vcmp.ne.s32.totalorder %v69, 0
    %vm87 = vcmp.ne.s32.totalorder %v77, 0
    %vm88 = vcmp.ne.s32.totalorder %v84, 0
    %v89 = vsel %vm85, 1, 0
    %v90 = vsel %vm86, 1, 0
    %v91 = vsel %vm87, 1, 0
    %v92 = vsel %vm88, 1, 0
    %v93 = vpack.c.b16 %v90, %v89
    %v94 = vpack.c.b16 %v92, %v91
    %v95 = vpack.c.b8 %v94, %v93
    %vm96 = vnez %v95
    %v97 = vsel %vm96, 16843009, 0
    %v98 = vcombine.high %v97, %v97
    %v100 = vunpack.c.l.s4 1966171168
    %v101 = vunpack.c.0.s8 %v100
    %v102 = vlaneseq
    %v103 = vshrl.u32 %v102, 7
    %v104 = vsub.s32 %v101, %v103
    %v105 = vrot.slane %v97, %v104
    %v107 = vunpack.c.l.s4 1966171168
    %v108 = vunpack.c.0.s8 %v107
    %v109 = vlaneseq
    %v110 = vshrl.u32 %v109, 7
    %v111 = vsub.s32 %v108, %v110
    %v112 = vrot.slane %v98, %v111
    %v113 = vcombine.high %v105, %v105
    %v114 = vcombine.high %v112, %v112
    %v116 = vunpack.c.l.s4 1966171168
    %v117 = vunpack.c.0.s8 %v116
    %v118 = vlaneseq
    %v119 = vshrl.u32 %v118, 7
    %v120 = vsub.s32 %v117, %v119
    %v121 = vrot.slane %v105, %v120
    %v123 = vunpack.c.l.s4 1966171168
    %v124 = vunpack.c.0.s8 %v123
    %v125 = vlaneseq
    %v126 = vshrl.u32 %v125, 7
    %v127 = vsub.s32 %v124, %v126
    %v128 = vrot.slane %v112, %v127
    %v130 = vunpack.c.l.s4 1966171168
    %v131 = vunpack.c.0.s8 %v130
    %v132 = vlaneseq
    %v133 = vshrl.u32 %v132, 7
    %v134 = vsub.s32 %v131, %v133
    %v135 = vrot.slane %v113, %v134
    %v137 = vunpack.c.l.s4 1966171168
    %v138 = vunpack.c.0.s8 %v137
    %v139 = vlaneseq
    %v140 = vshrl.u32 %v139, 7
    %v141 = vsub.s32 %v138, %v140
    %v142 = vrot.slane %v114, %v141
    %v143 = vcombine.high %v121, %v121
    %v144 = vcombine.high %v128, %v128
    %v145 = vcombine.high %v135, %v135
    %v146 = vcombine.high %v142, %v142
    %vm147 = vnez %v121
    %vm148 = vnez %v135
    %vm149 = vnez %v143
    %vm150 = vnez %v145
    %vm151 = vnez %v128
    %vm152 = vnez %v142
    %vm153 = vnez %v144
    %vm154 = vnez %v146
    %v155 = vsel %vm147, 16843009, 0
    %v156 = vsel %vm148, 16843009, 0
    %v157 = vsel %vm149, 16843009, 0
    %v158 = vsel %vm150, 16843009, 0
    %v159 = vsel %vm151, 16843009, 0
    %v160 = vsel %vm152, 16843009, 0
    %v161 = vsel %vm153, 16843009, 0
    %v162 = vsel %vm154, 16843009, 0
    %v163 = vcombine.low %v155, %v156
    %v164 = vcombine.low %v157, %v158
    %v165 = vcombine.low %v159, %v160
    %v166 = vcombine.low %v161, %v162
    %v168 = vunpack.c.l.s4 1966171168
    %v169 = vunpack.c.0.s8 %v168
    %v170 = vlaneseq
    %v171 = vshrl.u32 %v170, 7
    %v172 = vsub.s32 %v169, %v171
    %v173 = vrot.slane %v163, %v172
    %v175 = vunpack.c.l.s4 1966171168
    %v176 = vunpack.c.0.s8 %v175
    %v177 = vlaneseq
    %v178 = vshrl.u32 %v177, 7
    %v179 = vsub.s32 %v176, %v178
    %v180 = vrot.slane %v164, %v179
    %v182 = vunpack.c.l.s4 1966171168
    %v183 = vunpack.c.0.s8 %v182
    %v184 = vlaneseq
    %v185 = vshrl.u32 %v184, 7
    %v186 = vsub.s32 %v183, %v185
    %v187 = vrot.slane %v165, %v186
    %v189 = vunpack.c.l.s4 1966171168
    %v190 = vunpack.c.0.s8 %v189
    %v191 = vlaneseq
    %v192 = vshrl.u32 %v191, 7
    %v193 = vsub.s32 %v190, %v192
    %v194 = vrot.slane %v166, %v193
    %v195 = vcombine.low %v173, %v180
    %v196 = vcombine.low %v187, %v194
    %v198 = vunpack.c.l.s4 1966171168
    %v199 = vunpack.c.0.s8 %v198
    %v200 = vlaneseq
    %v201 = vshrl.u32 %v200, 7
    %v202 = vsub.s32 %v199, %v201
    %v203 = vrot.slane %v195, %v202
    %v205 = vunpack.c.l.s4 1966171168
    %v206 = vunpack.c.0.s8 %v205
    %v207 = vlaneseq
    %v208 = vshrl.u32 %v207, 7
    %v209 = vsub.s32 %v206, %v208
    %v210 = vrot.slane %v196, %v209
    %v211 = vcombine.low %v203, %v210
    %vm212 = vcmask 1040384
    %vm213 = vsmask.f32 256
    %vm214 = vmand %vm212, %vm213
    %vm215 = vcmask 1041409
    %vm216 = vsmask.f32 1280
    %vm217 = vmand %vm215, %vm216
    %vm218 = vmor %vm217, %vm214
    %vm219 = vcmask 1042434
    %vm220 = vsmask.f32 2304
    %vm221 = vmand %vm219, %vm220
    %vm222 = vmor %vm221, %vm218
    %vm223 = vcmask 1043459
    %vm224 = vsmask.f32 3328
    %vm225 = vmand %vm223, %vm224
    %vm226 = vmor %vm225, %vm222
    %vm227 = vcmask 1044484
    %vm228 = vsmask.f32 4352
    %vm229 = vmand %vm227, %vm228
    %vm230 = vmor %vm229, %vm226
    %vm231 = vcmask 1045509
    %vm232 = vsmask.f32 5376
    %vm233 = vmand %vm231, %vm232
    %vm234 = vmor %vm233, %vm230
    %vm235 = vcmask 1046534
    %vm236 = vsmask.f32 6400
    %vm237 = vmand %vm235, %vm236
    %vm238 = vmor %vm237, %vm234
    %vm239 = vcmask 1047559
    %vm240 = vsmask.f32 7424
    %vm241 = vmand %vm239, %vm240
    %vm242 = vmor %vm241, %vm238
    %v243 = vld [vmem:[#allocation11] sm:$0xff]
    %v244 = vsel %vm242, %v211, %v243
    %245 = vst [vmem:[#allocation11] sm:$0xff] %v244
    %vm246 = vcmp.lt.f32.partialorder %v33, 2.0
    %vm247 = vcmp.lt.f32.partialorder %v34, 2.0
    %v248 = vsel %vm246, 1, 0
    %v249 = vsel %vm247, 1, 0
    %v250 = vcombine.high %v248, %v248
    %v252 = vunpack.c.l.s4 1983009808
    %v253 = vunpack.c.0.s8 %v252
    %v254 = vlaneseq
    %v255 = vshrl.u32 %v254, 7
    %v256 = vsub.s32 %v253, %v255
    %v257 = vrot.slane %v248, %v256
    %v259 = vunpack.c.l.s4 1983009808
    %v260 = vunpack.c.0.s8 %v259
    %v261 = vlaneseq
    %v262 = vshrl.u32 %v261, 7
    %v263 = vsub.s32 %v260, %v262
    %v264 = vrot.slane %v250, %v263
    %v265 = vcombine.high %v249, %v249
    %v267 = vunpack.c.l.s4 1983009808
    %v268 = vunpack.c.0.s8 %v267
    %v269 = vlaneseq
    %v270 = vshrl.u32 %v269, 7
    %v271 = vsub.s32 %v268, %v270
    %v272 = vrot.slane %v249, %v271
    %v274 = vunpack.c.l.s4 1983009808
    %v275 = vunpack.c.0.s8 %v274
    %v276 = vlaneseq
    %v277 = vshrl.u32 %v276, 7
    %v278 = vsub.s32 %v275, %v277
    %v279 = vrot.slane %v265, %v278
    %vm280 = vcmp.ne.s32.totalorder %v257, 0
    %vm281 = vcmp.ne.s32.totalorder %v264, 0
    %vm282 = vcmp.ne.s32.totalorder %v272, 0
    %vm283 = vcmp.ne.s32.totalorder %v279, 0
    %v284 = vsel %vm280, 1, 0
    %v285 = vsel %vm281, 1, 0
    %v286 = vsel %vm282, 1, 0
    %v287 = vsel %vm283, 1, 0
    %v288 = vpack.c.b16 %v285, %v284
    %v289 = vpack.c.b16 %v287, %v286
    %v290 = vpack.c.b8 %v289, %v288
    %vm291 = vnez %v290
    %v292 = vsel %vm291, 16843009, 0
    %v293 = vcombine.high %v292, %v292
    %v295 = vunpack.c.l.s4 1966171168
    %v296 = vunpack.c.0.s8 %v295
    %v297 = vlaneseq
    %v298 = vshrl.u32 %v297, 7
    %v299 = vsub.s32 %v296, %v298
    %v300 = vrot.slane %v292, %v299
    %v302 = vunpack.c.l.s4 1966171168
    %v303 = vunpack.c.0.s8 %v302
    %v304 = vlaneseq
    %v305 = vshrl.u32 %v304, 7
    %v306 = vsub.s32 %v303, %v305
    %v307 = vrot.slane %v293, %v306
    %v308 = vcombine.high %v300, %v300
    %v309 = vcombine.high %v307, %v307
    %v311 = vunpack.c.l.s4 1966171168
    %v312 = vunpack.c.0.s8 %v311
    %v313 = vlaneseq
    %v314 = vshrl.u32 %v313, 7
    %v315 = vsub.s32 %v312, %v314
    %v316 = vrot.slane %v300, %v315
    %v318 = vunpack.c.l.s4 1966171168
    %v319 = vunpack.c.0.s8 %v318
    %v320 = vlaneseq
    %v321 = vshrl.u32 %v320, 7
    %v322 = vsub.s32 %v319, %v321
    %v323 = vrot.slane %v307, %v322
    %v325 = vunpack.c.l.s4 1966171168
    %v326 = vunpack.c.0.s8 %v325
    %v327 = vlaneseq
    %v328 = vshrl.u32 %v327, 7
    %v329 = vsub.s32 %v326, %v328
    %v330 = vrot.slane %v308, %v329
    %v332 = vunpack.c.l.s4 1966171168
    %v333 = vunpack.c.0.s8 %v332
    %v334 = vlaneseq
    %v335 = vshrl.u32 %v334, 7
    %v336 = vsub.s32 %v333, %v335
    %v337 = vrot.slane %v309, %v336
    %v338 = vcombine.high %v316, %v316
    %v339 = vcombine.high %v323, %v323
    %v340 = vcombine.high %v330, %v330
    %v341 = vcombine.high %v337, %v337
    %vm342 = vnez %v316
    %vm343 = vnez %v330
    %vm344 = vnez %v338
    %vm345 = vnez %v340
    %vm346 = vnez %v323
    %vm347 = vnez %v337
    %vm348 = vnez %v339
    %vm349 = vnez %v341
    %v350 = vsel %vm342, 16843009, 0
    %v351 = vsel %vm343, 16843009, 0
    %v352 = vsel %vm344, 16843009, 0
    %v353 = vsel %vm345, 16843009, 0
    %v354 = vsel %vm346, 16843009, 0
    %v355 = vsel %vm347, 16843009, 0
    %v356 = vsel %vm348, 16843009, 0
    %v357 = vsel %vm349, 16843009, 0
    %v358 = vcombine.low %v350, %v351
    %v359 = vcombine.low %v352, %v353
    %v360 = vcombine.low %v354, %v355
    %v361 = vcombine.low %v356, %v357
    %v363 = vunpack.c.l.s4 1966171168
    %v364 = vunpack.c.0.s8 %v363
    %v365 = vlaneseq
    %v366 = vshrl.u32 %v365, 7
    %v367 = vsub.s32 %v364, %v366
    %v368 = vrot.slane %v358, %v367
    %v370 = vunpack.c.l.s4 1966171168
    %v371 = vunpack.c.0.s8 %v370
    %v372 = vlaneseq
    %v373 = vshrl.u32 %v372, 7
    %v374 = vsub.s32 %v371, %v373
    %v375 = vrot.slane %v359, %v374
    %v377 = vunpack.c.l.s4 1966171168
    %v378 = vunpack.c.0.s8 %v377
    %v379 = vlaneseq
    %v380 = vshrl.u32 %v379, 7
    %v381 = vsub.s32 %v378, %v380
    %v382 = vrot.slane %v360, %v381
    %v384 = vunpack.c.l.s4 1966171168
    %v385 = vunpack.c.0.s8 %v384
    %v386 = vlaneseq
    %v387 = vshrl.u32 %v386, 7
    %v388 = vsub.s32 %v385, %v387
    %v389 = vrot.slane %v361, %v388
    %v390 = vcombine.low %v368, %v375
    %v391 = vcombine.low %v382, %v389
    %v393 = vunpack.c.l.s4 1966171168
    %v394 = vunpack.c.0.s8 %v393
    %v395 = vlaneseq
    %v396 = vshrl.u32 %v395, 7
    %v397 = vsub.s32 %v394, %v396
    %v398 = vrot.slane %v390, %v397
    %v400 = vunpack.c.l.s4 1966171168
    %v401 = vunpack.c.0.s8 %v400
    %v402 = vlaneseq
    %v403 = vshrl.u32 %v402, 7
    %v404 = vsub.s32 %v401, %v403
    %v405 = vrot.slane %v391, %v404
    %v406 = vcombine.low %v398, %v405
    %v407 = vld [vmem:[#allocation12] sm:$0xff]
    %v408 = vsel %vm242, %v406, %v407
    %409 = vst [vmem:[#allocation12] sm:$0xff] %v408
    %vm410 = vcmp.eq.f32.partialorder %v33, 0.0
    %vm411 = vcmp.eq.f32.partialorder %v34, 0.0
    %v412 = vsel %vm410, 1, 0
    %v413 = vsel %vm411, 1, 0
    %v414 = vcombine.high %v412, %v412
    %v416 = vunpack.c.l.s4 1983009808
    %v417 = vunpack.c.0.s8 %v416
    %v418 = vlaneseq
    %v419 = vshrl.u32 %v418, 7
    %v420 = vsub.s32 %v417, %v419
    %v421 = vrot.slane %v412, %v420
    %v423 = vunpack.c.l.s4 1983009808
    %v424 = vunpack.c.0.s8 %v423
    %v425 = vlaneseq
    %v426 = vshrl.u32 %v425, 7
    %v427 = vsub.s32 %v424, %v426
    %v428 = vrot.slane %v414, %v427
    %v429 = vcombine.high %v413, %v413
    %v431 = vunpack.c.l.s4 1983009808
    %v432 = vunpack.c.0.s8 %v431
    %v433 = vlaneseq
    %v434 = vshrl.u32 %v433, 7
    %v435 = vsub.s32 %v432, %v434
    %v436 = vrot.slane %v413, %v435
    %v438 = vunpack.c.l.s4 1983009808
    %v439 = vunpack.c.0.s8 %v438
    %v440 = vlaneseq
    %v441 = vshrl.u32 %v440, 7
    %v442 = vsub.s32 %v439, %v441
    %v443 = vrot.slane %v429, %v442
    %vm444 = vcmp.ne.s32.totalorder %v421, 0
    %vm445 = vcmp.ne.s32.totalorder %v428, 0
    %vm446 = vcmp.ne.s32.totalorder %v436, 0
    %vm447 = vcmp.ne.s32.totalorder %v443, 0
    %v448 = vsel %vm444, 1, 0
    %v449 = vsel %vm445, 1, 0
    %v450 = vsel %vm446, 1, 0
    %v451 = vsel %vm447, 1, 0
    %v452 = vpack.c.b16 %v449, %v448
    %v453 = vpack.c.b16 %v451, %v450
    %v454 = vpack.c.b8 %v453, %v452
    %vm455 = vnez %v454
    %v456 = vsel %vm455, 16843009, 0
    %v457 = vcombine.high %v456, %v456
    %v459 = vunpack.c.l.s4 1966171168
    %v460 = vunpack.c.0.s8 %v459
    %v461 = vlaneseq
    %v462 = vshrl.u32 %v461, 7
    %v463 = vsub.s32 %v460, %v462
    %v464 = vrot.slane %v456, %v463
    %v466 = vunpack.c.l.s4 1966171168
    %v467 = vunpack.c.0.s8 %v466
    %v468 = vlaneseq
    %v469 = vshrl.u32 %v468, 7
    %v470 = vsub.s32 %v467, %v469
    %v471 = vrot.slane %v457, %v470
    %v472 = vcombine.high %v464, %v464
    %v473 = vcombine.high %v471, %v471
    %v475 = vunpack.c.l.s4 1966171168
    %v476 = vunpack.c.0.s8 %v475
    %v477 = vlaneseq
    %v478 = vshrl.u32 %v477, 7
    %v479 = vsub.s32 %v476, %v478
    %v480 = vrot.slane %v464, %v479
    %v482 = vunpack.c.l.s4 1966171168
    %v483 = vunpack.c.0.s8 %v482
    %v484 = vlaneseq
    %v485 = vshrl.u32 %v484, 7
    %v486 = vsub.s32 %v483, %v485
    %v487 = vrot.slane %v471, %v486
    %v489 = vunpack.c.l.s4 1966171168
    %v490 = vunpack.c.0.s8 %v489
    %v491 = vlaneseq
    %v492 = vshrl.u32 %v491, 7
    %v493 = vsub.s32 %v490, %v492
    %v494 = vrot.slane %v472, %v493
    %v496 = vunpack.c.l.s4 1966171168
    %v497 = vunpack.c.0.s8 %v496
    %v498 = vlaneseq
    %v499 = vshrl.u32 %v498, 7
    %v500 = vsub.s32 %v497, %v499
    %v501 = vrot.slane %v473, %v500
    %v502 = vcombine.high %v480, %v480
    %v503 = vcombine.high %v487, %v487
    %v504 = vcombine.high %v494, %v494
    %v505 = vcombine.high %v501, %v501
    %vm506 = vnez %v480
    %vm507 = vnez %v494
    %vm508 = vnez %v502
    %vm509 = vnez %v504
    %vm510 = vnez %v487
    %vm511 = vnez %v501
    %vm512 = vnez %v503
    %vm513 = vnez %v505
    %v514 = vsel %vm506, 16843009, 0
    %v515 = vsel %vm507, 16843009, 0
    %v516 = vsel %vm508, 16843009, 0
    %v517 = vsel %vm509, 16843009, 0
    %v518 = vsel %vm510, 16843009, 0
    %v519 = vsel %vm511, 16843009, 0
    %v520 = vsel %vm512, 16843009, 0
    %v521 = vsel %vm513, 16843009, 0
    %v522 = vcombine.low %v514, %v515
    %v523 = vcombine.low %v516, %v517
    %v524 = vcombine.low %v518, %v519
    %v525 = vcombine.low %v520, %v521
    %v527 = vunpack.c.l.s4 1966171168
    %v528 = vunpack.c.0.s8 %v527
    %v529 = vlaneseq
    %v530 = vshrl.u32 %v529, 7
    %v531 = vsub.s32 %v528, %v530
    %v532 = vrot.slane %v522, %v531
    %v534 = vunpack.c.l.s4 1966171168
    %v535 = vunpack.c.0.s8 %v534
    %v536 = vlaneseq
    %v537 = vshrl.u32 %v536, 7
    %v538 = vsub.s32 %v535, %v537
    %v539 = vrot.slane %v523, %v538
    %v541 = vunpack.c.l.s4 1966171168
    %v542 = vunpack.c.0.s8 %v541
    %v543 = vlaneseq
    %v544 = vshrl.u32 %v543, 7
    %v545 = vsub.s32 %v542, %v544
    %v546 = vrot.slane %v524, %v545
    %v548 = vunpack.c.l.s4 1966171168
    %v549 = vunpack.c.0.s8 %v548
    %v550 = vlaneseq
    %v551 = vshrl.u32 %v550, 7
    %v552 = vsub.s32 %v549, %v551
    %v553 = vrot.slane %v525, %v552
    %v554 = vcombine.low %v532, %v539
    %v555 = vcombine.low %v546, %v553
    %v557 = vunpack.c.l.s4 1966171168
    %v558 = vunpack.c.0.s8 %v557
    %v559 = vlaneseq
    %v560 = vshrl.u32 %v559, 7
    %v561 = vsub.s32 %v558, %v560
    %v562 = vrot.slane %v554, %v561
    %v564 = vunpack.c.l.s4 1966171168
    %v565 = vunpack.c.0.s8 %v564
    %v566 = vlaneseq
    %v567 = vshrl.u32 %v566, 7
    %v568 = vsub.s32 %v565, %v567
    %v569 = vrot.slane %v555, %v568
    %v570 = vcombine.low %v562, %v569
    %v571 = vld [vmem:[#allocation14] sm:$0xff]
    %v572 = vsel %vm242, %v570, %v571
    %573 = vst [vmem:[#allocation14] sm:$0xff] %v572
    // Predicated region
    $region10: #{tpu_custom_call.1} parent=1 // pred_check
      _
    $region11: #{tpu_custom_call.1} parent=1 // pred_check_branch
      %575 = sbr.rel (0) target = $region13
    $region12: #{tpu_custom_call.1} parent=1 // pred_region
      %s577 = ssub.s32 256, 256
      %578 = vsyncadd [#allocation4], %s577
      %s580 = sshll.u32 [#allocation5], 4
      %s581 = int_to_ptr.vmem [resolvable:$true] %s580
      %583 = dma.vmem_to_hbm [thread:$0]  %s581, 256, %s1, [#allocation4]
    $region13: #{tpu_custom_call.1} parent=1 // pred_fallthru
      _
    // Predicated region
    $region14: #{tpu_custom_call.1} parent=1 // pred_check
      _
    $region15: #{tpu_custom_call.1} parent=1 // pred_check_branch
      %585 = sbr.rel (0) target = $region17
    $region16: #{tpu_custom_call.1} parent=1 // pred_region
      %s587 = ssub.s32 256, 256
      %588 = vsyncadd [#allocation7], %s587
      %s590 = sshll.u32 [#allocation6], 4
      %s591 = int_to_ptr.vmem [resolvable:$true] %s590
      %593 = dma.vmem_to_hbm [thread:$0]  %s591, 256, %s2, [#allocation7]
    $region17: #{tpu_custom_call.1} parent=1 // pred_fallthru
      _
    // Predicated region
    $region18: #{tpu_custom_call.1} parent=1 // pred_check
      _
    $region19: #{tpu_custom_call.1} parent=1 // pred_check_branch
      %595 = sbr.rel (0) target = $region21
    $region20: #{tpu_custom_call.1} parent=1 // pred_region
      %s597 = ssub.s32 256, 256
      %598 = vsyncadd [#allocation7], %s597
      %s600 = sshll.u32 [#allocation8], 4
      %s601 = int_to_ptr.vmem [resolvable:$true] %s600
      %603 = dma.vmem_to_hbm [thread:$0]  %s601, 256, %s3, [#allocation7]
    $region21: #{tpu_custom_call.1} parent=1 // pred_fallthru
      _
    // Predicated region
    $region22: #{tpu_custom_call.1} parent=1 // pred_check
      _
    $region23: #{tpu_custom_call.1} parent=1 // pred_check_branch
      %605 = sbr.rel (0) target = $region25
    $region24: #{tpu_custom_call.1} parent=1 // pred_region
      %s607 = ssub.s32 256, 256
      %608 = vsyncadd [#allocation10], %s607
      %s610 = sshll.u32 [#allocation9], 4
      %s611 = int_to_ptr.vmem [resolvable:$true] %s610
      %613 = dma.vmem_to_hbm [thread:$0]  %s611, 256, %s4, [#allocation10]
    $region25: #{tpu_custom_call.1} parent=1 // pred_fallthru
      _
    // Predicated region
    $region26: #{tpu_custom_call.1} parent=1 // pred_check
      _
    $region27: #{tpu_custom_call.1} parent=1 // pred_check_branch
      %615 = sbr.rel (0) target = $region29
    $region28: #{tpu_custom_call.1} parent=1 // pred_region
      %s617 = ssub.s32 128, 128
      %618 = vsyncadd [#allocation10], %s617
      %s620 = sshll.u32 [#allocation11], 4
      %s621 = int_to_ptr.vmem [resolvable:$true] %s620
      %623 = dma.vmem_to_hbm [thread:$0]  %s621, 128, %s5, [#allocation10]
    $region29: #{tpu_custom_call.1} parent=1 // pred_fallthru
      _
    // Predicated region
    $region30: #{tpu_custom_call.1} parent=1 // pred_check
      _
    $region31: #{tpu_custom_call.1} parent=1 // pred_check_branch
      %625 = sbr.rel (0) target = $region33
    $region32: #{tpu_custom_call.1} parent=1 // pred_region
      %s627 = ssub.s32 128, 128
      %628 = vsyncadd [#allocation13], %s627
      %s630 = sshll.u32 [#allocation12], 4
      %s631 = int_to_ptr.vmem [resolvable:$true] %s630
      %633 = dma.vmem_to_hbm [thread:$0]  %s631, 128, %s6, [#allocation13]
    $region33: #{tpu_custom_call.1} parent=1 // pred_fallthru
      _
    // Predicated region
    $region34: #{tpu_custom_call.1} parent=1 // pred_check
      _
    $region35: #{tpu_custom_call.1} parent=1 // pred_check_branch
      %635 = sbr.rel (0) target = $region37
    $region36: #{tpu_custom_call.1} parent=1 // pred_region
      %s637 = ssub.s32 128, 128
      %638 = vsyncadd [#allocation13], %s637
      %s640 = sshll.u32 [#allocation14], 4
      %s641 = int_to_ptr.vmem [resolvable:$true] %s640
      %643 = dma.vmem_to_hbm [thread:$0]  %s641, 128, %s7, [#allocation13]
    $region37: #{tpu_custom_call.1} parent=1 // pred_fallthru
      _
    // Predicated region
    $region38: #{tpu_custom_call.1} parent=1 // pred_check
      _
    $region39: #{tpu_custom_call.1} parent=1 // pred_check_branch
      %645 = sbr.rel (0) target = $region41
    $region40: #{tpu_custom_call.1} parent=1 // pred_region
      %646 = dma.done [#allocation4], 256
    $region41: #{tpu_custom_call.1} parent=1 // pred_fallthru
      _
    // Predicated region
    $region42: #{tpu_custom_call.1} parent=1 // pred_check
      _
    $region43: #{tpu_custom_call.1} parent=1 // pred_check_branch
      %648 = sbr.rel (0) target = $region45
    $region44: #{tpu_custom_call.1} parent=1 // pred_region
      %649 = dma.done [#allocation7], 256
    $region45: #{tpu_custom_call.1} parent=1 // pred_fallthru
      _
    // Predicated region
    $region46: #{tpu_custom_call.1} parent=1 // pred_check
      _
    $region47: #{tpu_custom_call.1} parent=1 // pred_check_branch
      %651 = sbr.rel (0) target = $region49
    $region48: #{tpu_custom_call.1} parent=1 // pred_region
      %652 = dma.done [#allocation7], 256
    $region49: #{tpu_custom_call.1} parent=1 // pred_fallthru
      _
    // Predicated region
    $region50: #{tpu_custom_call.1} parent=1 // pred_check
      _
    $region51: #{tpu_custom_call.1} parent=1 // pred_check_branch
      %654 = sbr.rel (0) target = $region53
    $region52: #{tpu_custom_call.1} parent=1 // pred_region
      %655 = dma.done [#allocation10], 256
    $region53: #{tpu_custom_call.1} parent=1 // pred_fallthru
      _
    // Predicated region
    $region54: #{tpu_custom_call.1} parent=1 // pred_check
      _
    $region55: #{tpu_custom_call.1} parent=1 // pred_check_branch
      %657 = sbr.rel (0) target = $region57
    $region56: #{tpu_custom_call.1} parent=1 // pred_region
      %658 = dma.done [#allocation10], 128
    $region57: #{tpu_custom_call.1} parent=1 // pred_fallthru
      _
    // Predicated region
    $region58: #{tpu_custom_call.1} parent=1 // pred_check
      _
    $region59: #{tpu_custom_call.1} parent=1 // pred_check_branch
      %660 = sbr.rel (0) target = $region61
    $region60: #{tpu_custom_call.1} parent=1 // pred_region
      %661 = dma.done [#allocation13], 128
    $region61: #{tpu_custom_call.1} parent=1 // pred_fallthru
      _
    // Predicated region
    $region62: #{tpu_custom_call.1} parent=1 // pred_check
      _
    $region63: #{tpu_custom_call.1} parent=1 // pred_check_branch
      %663 = sbr.rel (0) target = $region65
    $region64: #{tpu_custom_call.1} parent=1 // pred_region
      %664 = dma.done [#allocation13], 128
    $region65: #{tpu_custom_call.1} parent=1 // pred_fallthru
      _
    %665 = vsyncpa [#allocation3], 1
    %666 = vsyncpa [#allocation4], 1
    %667 = vsyncpa [#allocation7], 1
    %668 = vsyncpa [#allocation10], 1
    %669 = vsyncpa [#allocation13], 1

</llo_original>
